<compile_context>
chip_gen: v6e
topology: v6e:2x2x1
jax: 0.10.0
libtpu: 0.0.40
codegen_flags: <defaults>
</compile_context>

<pallas_src>
import functools
import math

import jax
import jax.numpy as jnp
from jax.experimental import pallas as pl
from jax.experimental.pallas import tpu as pltpu


def _round_up(x, n):
    return ((x + n - 1) // n) * n


def arc_margin_kernel(label_ref, x_ref, wt_ref, out_ref, wn_ref, *,
                      s, cos_m, sin_m, th, mm, easy_margin, ls_eps,
                      out_features, tc):
    c = pl.program_id(0)   # class-tile index (outer, "parallel")
    b = pl.program_id(1)   # batch-tile index (inner, "arbitrary")

    # Normalize the (F, TC) weight tile once per class tile; it stays resident
    # in VMEM across all inner batch iterations, cached as bf16 in scratch.
    @pl.when(b == 0)
    def _():
        w = wt_ref[...].astype(jnp.float32)                           # (F, TC)
        w_ss = jnp.sum(w * w, axis=0, keepdims=True)                  # (1, TC)
        inv_w = jax.lax.rsqrt(jnp.maximum(w_ss, 1e-24))
        wn_ref[...] = (w * inv_w).astype(jnp.bfloat16)

    # Normalize the (TB, F) activation tile (rsqrt + mul: one EUP pass).
    x = x_ref[...].astype(jnp.float32)                                # (TB, F)
    x_ss = jnp.sum(x * x, axis=1, keepdims=True)                      # (TB, 1)
    xn = (x * jax.lax.rsqrt(jnp.maximum(x_ss, 1e-24))).astype(jnp.bfloat16)

    # cosine = normalize(x) @ normalize(W).T  -> (TB, TC), MXU, f32 accumulate.
    cosine = jnp.dot(xn, wn_ref[...], preferred_element_type=jnp.float32)

    # Clamp the sqrt argument: bf16/f32 rounding can push |cosine| past 1.0.
    sine = jnp.sqrt(jnp.maximum(1.0 - cosine * cosine, 0.0))
    phi = cosine * cos_m - sine * sin_m
    if easy_margin:
        phi = jnp.where(cosine > 0.0, phi, cosine)
    else:
        phi = jnp.where(cosine > th, phi, cosine - mm)

    # One-hot from global int32 class indices (no dense (B, C) label stream).
    lab = label_ref[...]                                              # (TB, 1) int32
    col = jax.lax.broadcasted_iota(jnp.int32, cosine.shape, 1) + c * tc
    one_hot = (col == lab).astype(jnp.float32)
    if ls_eps > 0.0:
        one_hot = (1.0 - ls_eps) * one_hot + ls_eps / out_features

    out_ref[...] = ((one_hot * phi + (1.0 - one_hot) * cosine) * s).astype(out_ref.dtype)


def arc_margin_product(x, weight, label, *, s=30.0, m=0.5,
                       easy_margin=False, ls_eps=0.0,
                       block_b=256, block_c=512):
    """Forward pass of ArcMarginProduct.

    x:      (B, in_features) float
    weight: (out_features, in_features) float
    label:  (B, out_features) dense scores (argmax taken, like torch) or (B,) int indices
    """
    B, Fdim = x.shape
    C, F2 = weight.shape
    assert Fdim == F2

    # label.argmax(dim=-1) done in plain JAX (global index; required once C is tiled).
    if label.ndim == 2:
        label_idx = jnp.argmax(label, axis=-1).astype(jnp.int32)
    else:
        label_idx = label.astype(jnp.int32)
    assert label_idx.shape == (B,)

    # Tile sizes: lane-dense class tiles (mult of 128), sublane-aligned batch tiles.
    TB = min(block_b, _round_up(B, 8))
    TC = min(block_c, _round_up(C, 128))
    Fp = _round_up(Fdim, 128)
    Bp = _round_up(B, TB)
    Cp = _round_up(C, TC)

    # Layout prep (one-time, plain JAX): pad + transpose W to (F, C).
    xp = jnp.pad(x.astype(jnp.float32), ((0, Bp - B), (0, Fp - Fdim)))
    wt = jnp.pad(weight.astype(jnp.float32), ((0, Cp - C), (0, Fp - Fdim))).T   # (Fp, Cp)
    lab = jnp.pad(label_idx, (0, Bp - B), constant_values=-1).reshape(Bp, 1)

    nc, nb = Cp // TC, Bp // TB

    kernel = functools.partial(
        arc_margin_kernel,
        s=float(s),
        cos_m=math.cos(m),
        sin_m=math.sin(m),
        th=math.cos(math.pi - m),
        mm=math.sin(math.pi - m) * m,
        easy_margin=bool(easy_margin),
        ls_eps=float(ls_eps),
        out_features=C,
        tc=TC,
    )

    out = pl.pallas_call(
        kernel,
        out_shape=jax.ShapeDtypeStruct((Bp, Cp), jnp.float32),
        grid=(nc, nb),
        in_specs=[
            pl.BlockSpec((TB, 1), lambda c, b: (b, 0)),     # label indices
            pl.BlockSpec((TB, Fp), lambda c, b: (b, 0)),    # x
            pl.BlockSpec((Fp, TC), lambda c, b: (0, c)),    # W^T (resident per class tile)
        ],
        out_specs=pl.BlockSpec((TB, TC), lambda c, b: (b, c)),
        scratch_shapes=[pltpu.VMEM((Fp, TC), jnp.bfloat16)],   # cached normalized W tile
        compiler_params=pltpu.CompilerParams(
            dimension_semantics=("parallel", "arbitrary"),
            vmem_limit_bytes=32 * 1024 * 1024,
        ),
    )(lab, xp, wt)

    return out[:B, :C]


def arc_margin_reference(x, weight, label, *, s=30.0, m=0.5,
                         easy_margin=False, ls_eps=0.0):
    """Pure-JAX f32 reference mirroring the PyTorch module."""
    xn = x / jnp.maximum(jnp.linalg.norm(x, axis=1, keepdims=True), 1e-12)
    wn = weight / jnp.maximum(jnp.linalg.norm(weight, axis=1, keepdims=True), 1e-12)
    cosine = xn @ wn.T
    sine = jnp.sqrt(jnp.maximum(1.0 - cosine ** 2, 0.0))
    phi = cosine * math.cos(m) - sine * math.sin(m)
    if easy_margin:
        phi = jnp.where(cosine > 0.0, phi, cosine)
    else:
        phi = jnp.where(cosine > math.cos(math.pi - m), phi,
                        cosine - math.sin(math.pi - m) * m)
    one_hot = jax.nn.one_hot(jnp.argmax(label, axis=-1), weight.shape[0],
                             dtype=jnp.float32)
    if ls_eps > 0.0:
        one_hot = (1.0 - ls_eps) * one_hot + ls_eps / weight.shape[0]
    return (one_hot * phi + (1.0 - one_hot) * cosine) * s


def xavier_uniform(key, out_features, in_features):
    # nn.init.xavier_uniform_ for a (out, in) weight: bound = sqrt(6/(in+out))
    bound = math.sqrt(6.0 / (in_features + out_features))
    return jax.random.uniform(key, (out_features, in_features),
                              dtype=jnp.float32, minval=-bound, maxval=bound)


if __name__ == "__main__":
    key = jax.random.PRNGKey(0)
    k_w, k_x, k_lab = jax.random.split(key, 3)

    B, in_features, out_features = 16, 64, 200

    weight = xavier_uniform(k_w, out_features, in_features)
    x = jax.random.normal(k_x, (B, in_features), dtype=jnp.float32)
    lab_idx = jax.random.randint(k_lab, (B,), 0, out_features)
    label = jax.nn.one_hot(lab_idx, out_features, dtype=jnp.float32)

    out = arc_margin_product(x, weight, label, s=30.0, m=0.5,
                             easy_margin=False, ls_eps=0.0)
    out = jax.block_until_ready(out)

    assert out.shape == (B, out_features) and out.dtype == jnp.float32

    ref = arc_margin_reference(x, weight, label, s=30.0, m=0.5,
                               easy_margin=False, ls_eps=0.0)
    max_err = float(jnp.max(jnp.abs(out - ref)))
    # bf16 MXU inputs vs f32 reference -> loose absolute tolerance on s=30 scale.
    assert max_err < 0.5, f"max abs error {max_err}"

    print("KERNEL_OK")
</pallas_src>

<mosaic_0001>
module attributes {stable_mosaic.version = 11 : i64} {
  func.func @arc_margin_kernel(%arg0: i32, %arg1: i32, %arg2: memref<16x1xi32, #tpu.memory_space<vmem>>, %arg3: memref<16x128xf32, #tpu.memory_space<vmem>>, %arg4: memref<128x256xf32, #tpu.memory_space<vmem>>, %arg5: memref<16x256xf32, #tpu.memory_space<vmem>>, %arg6: memref<128x256xbf16, #tpu.memory_space<vmem>>) attributes {dimension_semantics = [#tpu.dimension_semantics<parallel>, #tpu.dimension_semantics<arbitrary>], iteration_bounds = array<i64: 1, 1>, scalar_prefetch = 0 : i64, scratch_operands = 1 : i64, tpu.core_type = #tpu.core_type<tc>, window_params = [{transform_indices = @transform_0, window_bounds = array<i64: 16, 1>}, {transform_indices = @transform_1, window_bounds = array<i64: 16, 128>}, {transform_indices = @transform_2, window_bounds = array<i64: 128, 256>}, {transform_indices = @transform_3, window_bounds = array<i64: 16, 256>}]} {
    %c0_i32 = arith.constant 0 : i32
    %0 = arith.cmpi eq, %arg1, %c0_i32 : i32
    %1 = arith.extui %0 : i1 to i32
    %c0_i32_0 = arith.constant 0 : i32
    %2 = arith.cmpi ne, %1, %c0_i32_0 : i32
    scf.if %2 {
      %c0_18 = arith.constant 0 : index
      %c0_19 = arith.constant 0 : index
      %48 = vector.load %arg4[%c0_18, %c0_19] : memref<128x256xf32, #tpu.memory_space<vmem>>, vector<128x256xf32>
      %49 = arith.mulf %48, %48 : vector<128x256xf32>
      %cst_20 = arith.constant dense<0.000000e+00> : vector<256xf32>
      %50 = vector.multi_reduction <add>, %49, %cst_20 [0] : vector<128x256xf32> to vector<256xf32>
      %51 = vector.shape_cast %50 : vector<256xf32> to vector<1x256xf32>
      %cst_21 = arith.constant 1.000000e-24 : f32
      %52 = vector.broadcast %cst_21 : f32 to vector<1x256xf32>
      %53 = arith.maximumf %51, %52 : vector<1x256xf32>
      %54 = math.rsqrt %53 : vector<1x256xf32>
      %55 = vector.broadcast %54 : vector<1x256xf32> to vector<128x256xf32>
      %56 = arith.mulf %48, %55 : vector<128x256xf32>
      %57 = arith.truncf %56 : vector<128x256xf32> to vector<128x256xbf16>
      %c0_22 = arith.constant 0 : index
      %c0_23 = arith.constant 0 : index
      %58 = vector.load %arg6[%c0_22, %c0_23] : memref<128x256xbf16, #tpu.memory_space<vmem>>, vector<128x256xbf16>
      tpu.vector_store %arg6[%c0_22, %c0_23], %57 {strides = array<i32>} : memref<128x256xbf16, #tpu.memory_space<vmem>>, vector<128x256xbf16>,
    } else {
    }
    %c0 = arith.constant 0 : index
    %c0_1 = arith.constant 0 : index
    %3 = vector.load %arg3[%c0, %c0_1] : memref<16x128xf32, #tpu.memory_space<vmem>>, vector<16x128xf32>
    %4 = arith.mulf %3, %3 : vector<16x128xf32>
    %cst = arith.constant dense<0.000000e+00> : vector<16xf32>
    %5 = vector.multi_reduction <add>, %4, %cst [1] : vector<16x128xf32> to vector<16xf32>
    %6 = vector.shape_cast %5 : vector<16xf32> to vector<16x1xf32>
    %cst_2 = arith.constant 1.000000e-24 : f32
    %7 = vector.broadcast %cst_2 : f32 to vector<16x1xf32>
    %8 = arith.maximumf %6, %7 : vector<16x1xf32>
    %9 = math.rsqrt %8 : vector<16x1xf32>
    %10 = vector.broadcast %9 : vector<16x1xf32> to vector<16x128xf32>
    %11 = arith.mulf %3, %10 : vector<16x128xf32>
    %12 = arith.truncf %11 : vector<16x128xf32> to vector<16x128xbf16>
    %c0_3 = arith.constant 0 : index
    %c0_4 = arith.constant 0 : index
    %13 = vector.load %arg6[%c0_3, %c0_4] : memref<128x256xbf16, #tpu.memory_space<vmem>>, vector<128x256xbf16>
    %cst_5 = arith.constant dense<0.000000e+00> : vector<16x256xf32>
    %14 = tpu.matmul %12, %13, %cst_5 {dimension_numbers = #tpu.dot_dimension_numbers<[1], [0], [0], [1], [0, 0, 1, 1], [], []>} : vector<16x128xbf16>, vector<128x256xbf16>, vector<16x256xf32> -> vector<16x256xf32>
    %15 = arith.mulf %14, %14 : vector<16x256xf32>
    %cst_6 = arith.constant 1.000000e+00 : f32
    %16 = vector.broadcast %cst_6 : f32 to vector<16x256xf32>
    %17 = arith.subf %16, %15 : vector<16x256xf32>
    %cst_7 = arith.constant 0.000000e+00 : f32
    %18 = vector.broadcast %cst_7 : f32 to vector<16x256xf32>
    %19 = arith.maximumf %17, %18 : vector<16x256xf32>
    %20 = math.sqrt %19 : vector<16x256xf32>
    %cst_8 = arith.constant 0.87758255 : f32
    %21 = vector.broadcast %cst_8 : f32 to vector<16x256xf32>
    %22 = arith.mulf %14, %21 : vector<16x256xf32>
    %cst_9 = arith.constant 0.47942555 : f32
    %23 = vector.broadcast %cst_9 : f32 to vector<16x256xf32>
    %24 = arith.mulf %20, %23 : vector<16x256xf32>
    %25 = arith.subf %22, %24 : vector<16x256xf32>
    %cst_10 = arith.constant -0.87758255 : f32
    %26 = vector.broadcast %cst_10 : f32 to vector<16x256xf32>
    %27 = arith.cmpf ogt, %14, %26 : vector<16x256xf32>
    %cst_11 = arith.constant 0.239712775 : f32
    %28 = vector.broadcast %cst_11 : f32 to vector<16x256xf32>
    %29 = arith.subf %14, %28 : vector<16x256xf32>
    %30 = arith.select %27, %25, %29 : vector<16x256xi1>, vector<16x256xf32>
    %c0_12 = arith.constant 0 : index
    %c0_13 = arith.constant 0 : index
    %31 = vector.load %arg2[%c0_12, %c0_13] : memref<16x1xi32, #tpu.memory_space<vmem>>, vector<16x1xi32>
    %32 = tpu.iota {dimensions = array<i32: 1>} : vector<16x256xi32>
    %c256_i32 = arith.constant 256 : i32
    %33 = arith.muli %arg0, %c256_i32 : i32
    %34 = vector.broadcast %33 : i32 to vector<16x256xi32>
    %35 = arith.addi %32, %34 : vector<16x256xi32>
    %36 = vector.broadcast %31 : vector<16x1xi32> to vector<16x256xi32>
    %37 = arith.cmpi eq, %35, %36 : vector<16x256xi32>
    %38 = arith.extui %37 : vector<16x256xi1> to vector<16x256xi32>
    %39 = arith.sitofp %38 : vector<16x256xi32> to vector<16x256xf32>
    %40 = arith.mulf %39, %30 : vector<16x256xf32>
    %cst_14 = arith.constant 1.000000e+00 : f32
    %41 = vector.broadcast %cst_14 : f32 to vector<16x256xf32>
    %42 = arith.subf %41, %39 : vector<16x256xf32>
    %43 = arith.mulf %42, %14 : vector<16x256xf32>
    %44 = arith.addf %40, %43 : vector<16x256xf32>
    %cst_15 = arith.constant 3.000000e+01 : f32
    %45 = vector.broadcast %cst_15 : f32 to vector<16x256xf32>
    %46 = arith.mulf %44, %45 : vector<16x256xf32>
    %c0_16 = arith.constant 0 : index
    %c0_17 = arith.constant 0 : index
    %47 = vector.load %arg5[%c0_16, %c0_17] : memref<16x256xf32, #tpu.memory_space<vmem>>, vector<16x256xf32>
    tpu.vector_store %arg5[%c0_16, %c0_17], %46 {strides = array<i32>} : memref<16x256xf32, #tpu.memory_space<vmem>>, vector<16x256xf32>,
    return
  }
  func.func @transform_0(%arg0: i32, %arg1: i32) -> (i32, i32) {
    %c0_i32 = arith.constant 0 : i32
    %c0_i32_0 = arith.constant 0 : i32
    return %arg1, %c0_i32 : i32, i32
  }
  func.func @transform_1(%arg0: i32, %arg1: i32) -> (i32, i32) {
    %c0_i32 = arith.constant 0 : i32
    %c0_i32_0 = arith.constant 0 : i32
    return %arg1, %c0_i32 : i32, i32
  }
  func.func @transform_2(%arg0: i32, %arg1: i32) -> (i32, i32) {
    %c0_i32 = arith.constant 0 : i32
    %c0_i32_0 = arith.constant 0 : i32
    return %c0_i32, %arg0 : i32, i32
  }
  func.func @transform_3(%arg0: i32, %arg1: i32) -> (i32, i32) {
    %c0_i32 = arith.constant 0 : i32
    return %arg1, %arg0 : i32, i32
  }
}

</mosaic_0001>

<llo_original>
// kernel: tpu_custom_call.1
$region0: #{tpu_custom_call.1}
  #allocation0 [shape = 'u32[]', space=smem, size = 0x4, offset = 0x4, fixed_abs, tag = 'smem constant byte address 0x4 - core index']
  #allocation1 [shape = 'u32[144,128]{1,0:T(1,128)}', space=vmem, size = 0x12000, scoped, tag = 'internal scratch']
  #allocation2 [shape = 'bf16[128,256]{1,0:T(8,128)(2,1)}', space=vmem, size = 0x10000, scoped, tag = 'scratch operand']
  %s0 = inlined_call_operand.vmem [shape: s32[16,1], index: 0, kind: input, shape index: {}]
  %s1 = inlined_call_operand.vmem [shape: f32[16,128], index: 1, kind: input, shape index: {}]
  %s2 = inlined_call_operand.hbm [shape: f32[128,256], index: 2, kind: input, shape index: {}]
  %s3 = inlined_call_operand.hbm [shape: f32[16,256], index: 3, kind: output, shape index: {}]
  %s4 = sld [smem:[#allocation0]]
  $region30: #{tpu_custom_call.1} parent=0
    _
  %s6 = ssub.s32 1, %s4
  %s7 = scalar_select 0, %s6, %s4
  $region1: #{tpu_custom_call.1} parent=0
    #allocation3 [shape = 'u8[131072]{0}', space=vmem, size = 0x20000, scoped, tag = 'input window, operand 2, single buffered']
    #allocation4 [shape = 's32[1]{0}', space=sflag, size = 0x4, scoped, tag = 'scoped memory for tpu_custom_call.1']
    #allocation5 [shape = 's32[1]{0}', space=sflag, size = 0x4, scoped, tag = 'scoped memory for tpu_custom_call.1']
    #allocation6 [shape = 'u8[16384]{0}', space=vmem, size = 0x4000, scoped, tag = 'output window, operand 0, single buffered']
    %8 = vsyncpa [#allocation4], 0
    %9 = vsyncpa [#allocation5], 0
    // Predicated region
    $region2: #{tpu_custom_call.1} parent=1 // pred_check
      _
    $region3: #{tpu_custom_call.1} parent=1 // pred_check_branch
      %11 = sbr.rel (0) target = $region5
    $region4: #{tpu_custom_call.1} parent=1 // pred_region
      _
    $region5: #{tpu_custom_call.1} parent=1 // pred_fallthru
      _
    // Predicated region
    $region6: #{tpu_custom_call.1} parent=1 // pred_check
      _
    $region7: #{tpu_custom_call.1} parent=1 // pred_check_branch
      %13 = sbr.rel (0) target = $region9
    $region8: #{tpu_custom_call.1} parent=1 // pred_region
      _
    $region9: #{tpu_custom_call.1} parent=1 // pred_fallthru
      _
    // Predicated region
    $region10: #{tpu_custom_call.1} parent=1 // pred_check
      _
    $region11: #{tpu_custom_call.1} parent=1 // pred_check_branch
      %15 = sbr.rel (0) target = $region13
    $region12: #{tpu_custom_call.1} parent=1 // pred_region
      %s17 = ssub.s32 4096, 4096
      %18 = vsyncadd [#allocation4], %s17
      %s19 = sshll.u32 [#allocation3], 4
      %s20 = int_to_ptr.vmem [resolvable:$true] %s19
      %25 = dma.hbm_to_vmem [thread:$0]  %s2, 4096, %s20, [#allocation4], 256, 256, 16
    $region13: #{tpu_custom_call.1} parent=1 // pred_fallthru
      _
    // Predicated region
    $region14: #{tpu_custom_call.1} parent=1 // pred_check
      _
    $region15: #{tpu_custom_call.1} parent=1 // pred_check_branch
      %27 = sbr.rel (0) target = $region17
    $region16: #{tpu_custom_call.1} parent=1 // pred_region
      %28 = dma.done [#allocation4], 4096
    $region17: #{tpu_custom_call.1} parent=1 // pred_fallthru
      _
    %p30 = scmp.eq.s32.totalorder 0, 0
    // Predicated region
    $region18: #{tpu_custom_call.1} parent=1 // pred_check
      %p31 = pneg %p30
    $region19: #{tpu_custom_call.1} parent=1 // pred_check_branch
      %33 = sbr.rel (%p31) target = $region21
    $region20: #{tpu_custom_call.1} parent=1 // pred_region
      %v34 = vld [vmem:[#allocation3] sm:$0xff]
      %v35 = vld [vmem:[#allocation3 + $0x8] sm:$0xff]
      %v36 = vld [vmem:[#allocation3 + $0x10] sm:$0xff]
      %v37 = vld [vmem:[#allocation3 + $0x18] sm:$0xff]
      %v38 = vld [vmem:[#allocation3 + $0x20] sm:$0xff]
      %v39 = vld [vmem:[#allocation3 + $0x28] sm:$0xff]
      %v40 = vld [vmem:[#allocation3 + $0x30] sm:$0xff]
      %v41 = vld [vmem:[#allocation3 + $0x38] sm:$0xff]
      %v42 = vld [vmem:[#allocation3 + $0x40] sm:$0xff]
      %v43 = vld [vmem:[#allocation3 + $0x48] sm:$0xff]
      %v44 = vld [vmem:[#allocation3 + $0x50] sm:$0xff]
      %v45 = vld [vmem:[#allocation3 + $0x58] sm:$0xff]
      %v46 = vld [vmem:[#allocation3 + $0x60] sm:$0xff]
      %v47 = vld [vmem:[#allocation3 + $0x68] sm:$0xff]
      %v48 = vld [vmem:[#allocation3 + $0x70] sm:$0xff]
      %v49 = vld [vmem:[#allocation3 + $0x78] sm:$0xff]
      %v50 = vld [vmem:[#allocation3 + $0x80] sm:$0xff]
      %v51 = vld [vmem:[#allocation3 + $0x88] sm:$0xff]
      %v52 = vld [vmem:[#allocation3 + $0x90] sm:$0xff]
      %v53 = vld [vmem:[#allocation3 + $0x98] sm:$0xff]
      %v54 = vld [vmem:[#allocation3 + $0xa0] sm:$0xff]
      %v55 = vld [vmem:[#allocation3 + $0xa8] sm:$0xff]
      %v56 = vld [vmem:[#allocation3 + $0xb0] sm:$0xff]
      %v57 = vld [vmem:[#allocation3 + $0xb8] sm:$0xff]
      %v58 = vld [vmem:[#allocation3 + $0xc0] sm:$0xff]
      %v59 = vld [vmem:[#allocation3 + $0xc8] sm:$0xff]
      %v60 = vld [vmem:[#allocation3 + $0xd0] sm:$0xff]
      %v61 = vld [vmem:[#allocation3 + $0xd8] sm:$0xff]
      %v62 = vld [vmem:[#allocation3 + $0xe0] sm:$0xff]
      %v63 = vld [vmem:[#allocation3 + $0xe8] sm:$0xff]
      %v64 = vld [vmem:[#allocation3 + $0xf0] sm:$0xff]
      %v65 = vld [vmem:[#allocation3 + $0xf8] sm:$0xff]
      %v66 = vmul.f32 %v34, %v34
      %v67 = vmul.f32 %v35, %v35
      %v68 = vmul.f32 %v36, %v36
      %v69 = vmul.f32 %v37, %v37
      %v70 = vmul.f32 %v38, %v38
      %v71 = vmul.f32 %v39, %v39
      %v72 = vmul.f32 %v40, %v40
      %v73 = vmul.f32 %v41, %v41
      %v74 = vmul.f32 %v42, %v42
      %v75 = vmul.f32 %v43, %v43
      %v76 = vmul.f32 %v44, %v44
      %v77 = vmul.f32 %v45, %v45
      %v78 = vmul.f32 %v46, %v46
      %v79 = vmul.f32 %v47, %v47
      %v80 = vmul.f32 %v48, %v48
      %v81 = vmul.f32 %v49, %v49
      %v82 = vmul.f32 %v50, %v50
      %v83 = vmul.f32 %v51, %v51
      %v84 = vmul.f32 %v52, %v52
      %v85 = vmul.f32 %v53, %v53
      %v86 = vmul.f32 %v54, %v54
      %v87 = vmul.f32 %v55, %v55
      %v88 = vmul.f32 %v56, %v56
      %v89 = vmul.f32 %v57, %v57
      %v90 = vmul.f32 %v58, %v58
      %v91 = vmul.f32 %v59, %v59
      %v92 = vmul.f32 %v60, %v60
      %v93 = vmul.f32 %v61, %v61
      %v94 = vmul.f32 %v62, %v62
      %v95 = vmul.f32 %v63, %v63
      %v96 = vmul.f32 %v64, %v64
      %v97 = vmul.f32 %v65, %v65
      %v98 = vadd.f32 %v66, %v68
      %v99 = vadd.f32 %v98, %v70
      %v100 = vadd.f32 %v99, %v72
      %v101 = vadd.f32 %v100, %v74
      %v102 = vadd.f32 %v101, %v76
      %v103 = vadd.f32 %v102, %v78
      %v104 = vadd.f32 %v103, %v80
      %v105 = vadd.f32 %v104, %v82
      %v106 = vadd.f32 %v105, %v84
      %v107 = vadd.f32 %v106, %v86
      %v108 = vadd.f32 %v107, %v88
      %v109 = vadd.f32 %v108, %v90
      %v110 = vadd.f32 %v109, %v92
      %v111 = vadd.f32 %v110, %v94
      %v112 = vadd.f32 %v111, %v96
      %v113 = vrot.slane %v112, 4
      %v114 = vadd.f32 %v112, %v113
      %v115 = vrot.slane %v114, 2
      %v116 = vadd.f32 %v114, %v115
      %v117 = vrot.slane %v116, 1
      %v118 = vadd.f32 %v116, %v117
      %v119 = vadd.f32 %v67, %v69
      %v120 = vadd.f32 %v119, %v71
      %v121 = vadd.f32 %v120, %v73
      %v122 = vadd.f32 %v121, %v75
      %v123 = vadd.f32 %v122, %v77
      %v124 = vadd.f32 %v123, %v79
      %v125 = vadd.f32 %v124, %v81
      %v126 = vadd.f32 %v125, %v83
      %v127 = vadd.f32 %v126, %v85
      %v128 = vadd.f32 %v127, %v87
      %v129 = vadd.f32 %v128, %v89
      %v130 = vadd.f32 %v129, %v91
      %v131 = vadd.f32 %v130, %v93
      %v132 = vadd.f32 %v131, %v95
      %v133 = vadd.f32 %v132, %v97
      %v134 = vrot.slane %v133, 4
      %v135 = vadd.f32 %v133, %v134
      %v136 = vrot.slane %v135, 2
      %v137 = vadd.f32 %v135, %v136
      %v138 = vrot.slane %v137, 1
      %v139 = vadd.f32 %v137, %v138
      %v140 = vmax.f32 %v118, 1e-24
      %v141 = vmax.f32 %v139, 1e-24
      %v142 = vrsqrt.pop %v140
      %v143 = vrsqrt.pop %v141
      %v144 = vmul.f32 %v34, %v142
      %v145 = vmul.f32 %v35, %v143
      %v146 = vmul.f32 %v36, %v142
      %v147 = vmul.f32 %v37, %v143
      %v148 = vmul.f32 %v38, %v142
      %v149 = vmul.f32 %v39, %v143
      %v150 = vmul.f32 %v40, %v142
      %v151 = vmul.f32 %v41, %v143
      %v152 = vmul.f32 %v42, %v142
      %v153 = vmul.f32 %v43, %v143
      %v154 = vmul.f32 %v44, %v142
      %v155 = vmul.f32 %v45, %v143
      %v156 = vmul.f32 %v46, %v142
      %v157 = vmul.f32 %v47, %v143
      %v158 = vmul.f32 %v48, %v142
      %v159 = vmul.f32 %v49, %v143
      %v160 = vmul.f32 %v50, %v142
      %v161 = vmul.f32 %v51, %v143
      %v162 = vmul.f32 %v52, %v142
      %v163 = vmul.f32 %v53, %v143
      %v164 = vmul.f32 %v54, %v142
      %v165 = vmul.f32 %v55, %v143
      %v166 = vmul.f32 %v56, %v142
      %v167 = vmul.f32 %v57, %v143
      %v168 = vmul.f32 %v58, %v142
      %v169 = vmul.f32 %v59, %v143
      %v170 = vmul.f32 %v60, %v142
      %v171 = vmul.f32 %v61, %v143
      %v172 = vmul.f32 %v62, %v142
      %v173 = vmul.f32 %v63, %v143
      %v174 = vmul.f32 %v64, %v142
      %v175 = vmul.f32 %v65, %v143
      %v176 = vpack.c.bf16 %v146, %v144
      %v177 = vpack.c.bf16 %v147, %v145
      %v178 = vpack.c.bf16 %v150, %v148
      %v179 = vpack.c.bf16 %v151, %v149
      %v180 = vpack.c.bf16 %v154, %v152
      %v181 = vpack.c.bf16 %v155, %v153
      %v182 = vpack.c.bf16 %v158, %v156
      %v183 = vpack.c.bf16 %v159, %v157
      %v184 = vpack.c.bf16 %v162, %v160
      %v185 = vpack.c.bf16 %v163, %v161
      %v186 = vpack.c.bf16 %v166, %v164
      %v187 = vpack.c.bf16 %v167, %v165
      %v188 = vpack.c.bf16 %v170, %v168
      %v189 = vpack.c.bf16 %v171, %v169
      %v190 = vpack.c.bf16 %v174, %v172
      %v191 = vpack.c.bf16 %v175, %v173
      %v208 = vunpack.c.l.b16 %v176
      %v209 = vunpack.c.l.b16 %v177
      %v210 = vunpack.c.h.b16 %v176
      %v211 = vunpack.c.h.b16 %v177
      %v212 = vunpack.c.l.b16 %v178
      %v213 = vunpack.c.l.b16 %v179
      %v214 = vunpack.c.h.b16 %v178
      %v215 = vunpack.c.h.b16 %v179
      %v216 = vunpack.c.l.b16 %v180
      %v217 = vunpack.c.l.b16 %v181
      %v218 = vunpack.c.h.b16 %v180
      %v219 = vunpack.c.h.b16 %v181
      %v220 = vunpack.c.l.b16 %v182
      %v221 = vunpack.c.l.b16 %v183
      %v222 = vunpack.c.h.b16 %v182
      %v223 = vunpack.c.h.b16 %v183
      %v224 = vunpack.c.l.b16 %v184
      %v225 = vunpack.c.l.b16 %v185
      %v226 = vunpack.c.h.b16 %v184
      %v227 = vunpack.c.h.b16 %v185
      %v228 = vunpack.c.l.b16 %v186
      %v229 = vunpack.c.l.b16 %v187
      %v230 = vunpack.c.h.b16 %v186
      %v231 = vunpack.c.h.b16 %v187
      %v232 = vunpack.c.l.b16 %v188
      %v233 = vunpack.c.l.b16 %v189
      %v234 = vunpack.c.h.b16 %v188
      %v235 = vunpack.c.h.b16 %v189
      %v236 = vunpack.c.l.b16 %v190
      %v237 = vunpack.c.l.b16 %v191
      %v238 = vunpack.c.h.b16 %v190
      %v239 = vunpack.c.h.b16 %v191
      %v240 = vpack.c.b16 %v209, %v208
      %v241 = vpack.c.b16 %v211, %v210
      %v242 = vpack.c.b16 %v213, %v212
      %v243 = vpack.c.b16 %v215, %v214
      %v244 = vpack.c.b16 %v217, %v216
      %v245 = vpack.c.b16 %v219, %v218
      %v246 = vpack.c.b16 %v221, %v220
      %v247 = vpack.c.b16 %v223, %v222
      %v248 = vpack.c.b16 %v225, %v224
      %v249 = vpack.c.b16 %v227, %v226
      %v250 = vpack.c.b16 %v229, %v228
      %v251 = vpack.c.b16 %v231, %v230
      %v252 = vpack.c.b16 %v233, %v232
      %v253 = vpack.c.b16 %v235, %v234
      %v254 = vpack.c.b16 %v237, %v236
      %v255 = vpack.c.b16 %v239, %v238
      %272 = vst [vmem:[#allocation2] sm:$0xff] %v240
      %273 = vst [vmem:[#allocation2 + $0x8] sm:$0xff] %v241
      %274 = vst [vmem:[#allocation2 + $0x10] sm:$0xff] %v242
      %275 = vst [vmem:[#allocation2 + $0x18] sm:$0xff] %v243
      %276 = vst [vmem:[#allocation2 + $0x20] sm:$0xff] %v244
      %277 = vst [vmem:[#allocation2 + $0x28] sm:$0xff] %v245
      %278 = vst [vmem:[#allocation2 + $0x30] sm:$0xff] %v246
      %279 = vst [vmem:[#allocation2 + $0x38] sm:$0xff] %v247
      %280 = vst [vmem:[#allocation2 + $0x40] sm:$0xff] %v248
      %281 = vst [vmem:[#allocation2 + $0x48] sm:$0xff] %v249
      %282 = vst [vmem:[#allocation2 + $0x50] sm:$0xff] %v250
      %283 = vst [vmem:[#allocation2 + $0x58] sm:$0xff] %v251
      %284 = vst [vmem:[#allocation2 + $0x60] sm:$0xff] %v252
      %285 = vst [vmem:[#allocation2 + $0x68] sm:$0xff] %v253
      %286 = vst [vmem:[#allocation2 + $0x70] sm:$0xff] %v254
      %287 = vst [vmem:[#allocation2 + $0x78] sm:$0xff] %v255
    $region21: #{tpu_custom_call.1} parent=1 // pred_fallthru
      _
    %v288 = vld [vmem:[%s1] sm:$0xff]
    %v289 = vld [vmem:[%s1 + $0x8] sm:$0xff]
    %v290 = vmul.f32 %v288, %v288
    %v291 = vmul.f32 %v289, %v289
    %292 = vadd.xlane.f32.xlu0 %v290
    %v293 = vpop.xlane.xlu0 %292
    %294 = vadd.xlane.f32.xlu0 %v291
    %v295 = vpop.xlane.xlu0 %294
    %v296 = vmax.f32 %v293, 1e-24
    %v297 = vmax.f32 %v295, 1e-24
    %v298 = vrsqrt.pop %v296
    %v299 = vrsqrt.pop %v297
    %v300 = vmul.f32 %v288, %v298
    %v301 = vmul.f32 %v289, %v299
    %v302 = vpack.c.bf16 %v301, %v300
    %v303 = vld [vmem:[#allocation2] sm:$0xff]
    %v304 = vld [vmem:[#allocation2 + $0x8] sm:$0xff]
    %v305 = vld [vmem:[#allocation2 + $0x10] sm:$0xff]
    %v306 = vld [vmem:[#allocation2 + $0x18] sm:$0xff]
    %v307 = vld [vmem:[#allocation2 + $0x20] sm:$0xff]
    %v308 = vld [vmem:[#allocation2 + $0x28] sm:$0xff]
    %v309 = vld [vmem:[#allocation2 + $0x30] sm:$0xff]
    %v310 = vld [vmem:[#allocation2 + $0x38] sm:$0xff]
    %v311 = vld [vmem:[#allocation2 + $0x40] sm:$0xff]
    %v312 = vld [vmem:[#allocation2 + $0x48] sm:$0xff]
    %v313 = vld [vmem:[#allocation2 + $0x50] sm:$0xff]
    %v314 = vld [vmem:[#allocation2 + $0x58] sm:$0xff]
    %v315 = vld [vmem:[#allocation2 + $0x60] sm:$0xff]
    %v316 = vld [vmem:[#allocation2 + $0x68] sm:$0xff]
    %v317 = vld [vmem:[#allocation2 + $0x70] sm:$0xff]
    %v318 = vld [vmem:[#allocation2 + $0x78] sm:$0xff]
    %v335 = vunpack.c.l.b16 %v303
    %v336 = vunpack.c.h.b16 %v303
    %v337 = vunpack.c.l.b16 %v304
    %v338 = vunpack.c.h.b16 %v304
    %v339 = vunpack.c.l.b16 %v305
    %v340 = vunpack.c.h.b16 %v305
    %v341 = vunpack.c.l.b16 %v306
    %v342 = vunpack.c.h.b16 %v306
    %v343 = vunpack.c.l.b16 %v307
    %v344 = vunpack.c.h.b16 %v307
    %v345 = vunpack.c.l.b16 %v308
    %v346 = vunpack.c.h.b16 %v308
    %v347 = vunpack.c.l.b16 %v309
    %v348 = vunpack.c.h.b16 %v309
    %v349 = vunpack.c.l.b16 %v310
    %v350 = vunpack.c.h.b16 %v310
    %v351 = vunpack.c.l.b16 %v311
    %v352 = vunpack.c.h.b16 %v311
    %v353 = vunpack.c.l.b16 %v312
    %v354 = vunpack.c.h.b16 %v312
    %v355 = vunpack.c.l.b16 %v313
    %v356 = vunpack.c.h.b16 %v313
    %v357 = vunpack.c.l.b16 %v314
    %v358 = vunpack.c.h.b16 %v314
    %v359 = vunpack.c.l.b16 %v315
    %v360 = vunpack.c.h.b16 %v315
    %v361 = vunpack.c.l.b16 %v316
    %v362 = vunpack.c.h.b16 %v316
    %v363 = vunpack.c.l.b16 %v317
    %v364 = vunpack.c.h.b16 %v317
    %v365 = vunpack.c.l.b16 %v318
    %v366 = vunpack.c.h.b16 %v318
    %v367 = vpack.c.b16 %v337, %v335
    %v368 = vpack.c.b16 %v338, %v336
    %v369 = vpack.c.b16 %v341, %v339
    %v370 = vpack.c.b16 %v342, %v340
    %v371 = vpack.c.b16 %v345, %v343
    %v372 = vpack.c.b16 %v346, %v344
    %v373 = vpack.c.b16 %v349, %v347
    %v374 = vpack.c.b16 %v350, %v348
    %v375 = vpack.c.b16 %v353, %v351
    %v376 = vpack.c.b16 %v354, %v352
    %v377 = vpack.c.b16 %v357, %v355
    %v378 = vpack.c.b16 %v358, %v356
    %v379 = vpack.c.b16 %v361, %v359
    %v380 = vpack.c.b16 %v362, %v360
    %v381 = vpack.c.b16 %v365, %v363
    %v382 = vpack.c.b16 %v366, %v364
    %399 = vmatprep.subr.bf16.mxu0 %v382
    %400 = vmatpush1.bf16.msra.mxu0 %v381
    %401 = vmatprep.subr.bf16.mxu0 %v380
    %402 = vmatpush1.bf16.msra.mxu0 %v379
    %403 = vmatprep.subr.bf16.mxu0 %v378
    %404 = vmatpush1.bf16.msra.mxu0 %v377
    %405 = vmatprep.subr.bf16.mxu0 %v376
    %406 = vmatpush1.bf16.msra.mxu0 %v375
    %407 = vmatprep.subr.bf16.mxu0 %v374
    %408 = vmatpush1.bf16.msra.mxu0 %v373
    %409 = vmatprep.subr.bf16.mxu0 %v372
    %410 = vmatpush1.bf16.msra.mxu0 %v371
    %411 = vmatprep.subr.bf16.mxu0 %v370
    %412 = vmatpush1.bf16.msra.mxu0 %v369
    %413 = vmatprep.subr.bf16.mxu0 %v368
    %414 = vmatpush1.bf16.msra.mxu0 %v367
    %415 = vmatprep.subr.bf16.mxu0 0
    %416 = vmatpush2.bf16.msra.mxu0 0
    %417 = vmatprep.subr.bf16.mxu0 0
    %418 = vmatpush2.bf16.msra.mxu0 0
    %419 = vmatprep.subr.bf16.mxu0 0
    %420 = vmatpush2.bf16.msra.mxu0 0
    %421 = vmatprep.subr.bf16.mxu0 0
    %422 = vmatpush2.bf16.msra.mxu0 0
    %423 = vmatprep.subr.bf16.mxu0 0
    %424 = vmatpush2.bf16.msra.mxu0 0
    %425 = vmatprep.subr.bf16.mxu0 0
    %426 = vmatpush2.bf16.msra.mxu0 0
    %427 = vmatprep.subr.bf16.mxu0 0
    %428 = vmatpush2.bf16.msra.mxu0 0
    %429 = vmatprep.subr.bf16.mxu0 0
    %430 = vmatpush2.bf16.msra.mxu0 0
    %431 = vmatprep.mubr.bf16.mxu0 0
    %432 = vmatmul.mubr.bf16.gmra.mxu0 %v302
    %v433 = vpop.f32.mrf.mxu0
    %v434 = vadd.f32 0.0, %v433
    %v435 = vpop.f32.mrf.mxu0
    %v436 = vadd.f32 0.0, %v435
    %v437 = vpop.f32.mrf.mxu0
    %v438 = vadd.f32 0.0, %v437
    %v439 = vpop.f32.mrf.mxu0
    %v440 = vadd.f32 0.0, %v439
    %441 = vdwg.mxu0
    %v442 = vmul.f32 %v434, %v434
    %v443 = vmul.f32 %v436, %v436
    %v444 = vmul.f32 %v438, %v438
    %v445 = vmul.f32 %v440, %v440
    %v446 = vsub.f32 1.0, %v442
    %v447 = vsub.f32 1.0, %v443
    %v448 = vsub.f32 1.0, %v444
    %v449 = vsub.f32 1.0, %v445
    %v450 = vmax.f32 %v446, 0.0
    %v451 = vmax.f32 %v447, 0.0
    %v452 = vmax.f32 %v448, 0.0
    %v453 = vmax.f32 %v449, 0.0
    %v454 = vrsqrt.pop %v450
    %v455 = vmul.f32 %v450, %v454
    %vm456 = vcmp.eq.f32.partialorder %v450, inf
    %v457 = vsel %vm456, %v450, %v455
    %vm458 = vcmp.eq.f32.partialorder %v450, 0.0
    %v459 = vand.u32 %v450, 2147483648
    %v460 = vsel %vm458, %v459, %v457
    %v461 = vrsqrt.pop %v451
    %v462 = vmul.f32 %v451, %v461
    %vm463 = vcmp.eq.f32.partialorder %v451, inf
    %v464 = vsel %vm463, %v451, %v462
    %vm465 = vcmp.eq.f32.partialorder %v451, 0.0
    %v466 = vand.u32 %v451, 2147483648
    %v467 = vsel %vm465, %v466, %v464
    %v468 = vrsqrt.pop %v452
    %v469 = vmul.f32 %v452, %v468
    %vm470 = vcmp.eq.f32.partialorder %v452, inf
    %v471 = vsel %vm470, %v452, %v469
    %vm472 = vcmp.eq.f32.partialorder %v452, 0.0
    %v473 = vand.u32 %v452, 2147483648
    %v474 = vsel %vm472, %v473, %v471
    %v475 = vrsqrt.pop %v453
    %v476 = vmul.f32 %v453, %v475
    %vm477 = vcmp.eq.f32.partialorder %v453, inf
    %v478 = vsel %vm477, %v453, %v476
    %vm479 = vcmp.eq.f32.partialorder %v453, 0.0
    %v480 = vand.u32 %v453, 2147483648
    %v481 = vsel %vm479, %v480, %v478
    %v482 = vmul.f32 %v434, 0.87758255
    %v483 = vmul.f32 %v436, 0.87758255
    %v484 = vmul.f32 %v438, 0.87758255
    %v485 = vmul.f32 %v440, 0.87758255
    %v486 = vmul.f32 %v460, 0.47942555
    %v487 = vmul.f32 %v467, 0.47942555
    %v488 = vmul.f32 %v474, 0.47942555
    %v489 = vmul.f32 %v481, 0.47942555
    %v490 = vsub.f32 %v482, %v486
    %v491 = vsub.f32 %v483, %v487
    %v492 = vsub.f32 %v484, %v488
    %v493 = vsub.f32 %v485, %v489
    %vm494 = vcmp.gt.f32.partialorder %v434, -0.87758255
    %vm495 = vcmp.gt.f32.partialorder %v436, -0.87758255
    %vm496 = vcmp.gt.f32.partialorder %v438, -0.87758255
    %vm497 = vcmp.gt.f32.partialorder %v440, -0.87758255
    %v498 = vsub.f32 %v434, 0.23971277
    %v499 = vsub.f32 %v436, 0.23971277
    %v500 = vsub.f32 %v438, 0.23971277
    %v501 = vsub.f32 %v440, 0.23971277
    %v502 = vsel %vm494, %v490, %v498
    %v503 = vsel %vm495, %v491, %v499
    %v504 = vsel %vm496, %v492, %v500
    %v505 = vsel %vm497, %v493, %v501
    %v506 = vld [vmem:[%s0] sm:$0xff]
    %v507 = vld [vmem:[%s0 + $0x8] sm:$0xff]
    %v508 = vlaneseq
    %v509 = vand.u32 %v508, 127
    %v510 = vadd.s32 %v509, 128
    %s511 = smul.u32 0, 256
    %v512 = vstv %s511
    %v513 = vadd.s32 %v509, %v512
    %v514 = vadd.s32 %v510, %v512
    %515 = vset.pattern.permute.xlu0 0
    %516 = vperm.xlu0 %515, %v506
    %v517 = vpop.permute.xlu0 %516
    %518 = vset.pattern.permute.xlu0 0
    %519 = vperm.xlu0 %518, %v507
    %v520 = vpop.permute.xlu0 %519
    %vm521 = vcmp.eq.s32.totalorder %v513, %v517
    %vm522 = vcmp.eq.s32.totalorder %v514, %v517
    %vm523 = vcmp.eq.s32.totalorder %v513, %v520
    %vm524 = vcmp.eq.s32.totalorder %v514, %v520
    %v525 = vsel %vm521, 1, 0
    %v526 = vsel %vm522, 1, 0
    %v527 = vsel %vm523, 1, 0
    %v528 = vsel %vm524, 1, 0
    %v529 = vcvt.s32.f32 %v525
    %v530 = vcvt.s32.f32 %v526
    %v531 = vcvt.s32.f32 %v527
    %v532 = vcvt.s32.f32 %v528
    %v533 = vmul.f32 %v529, %v502
    %v534 = vmul.f32 %v530, %v503
    %v535 = vmul.f32 %v531, %v504
    %v536 = vmul.f32 %v532, %v505
    %v537 = vsub.f32 1.0, %v529
    %v538 = vsub.f32 1.0, %v530
    %v539 = vsub.f32 1.0, %v531
    %v540 = vsub.f32 1.0, %v532
    %v541 = vmul.f32 %v537, %v434
    %v542 = vmul.f32 %v538, %v436
    %v543 = vmul.f32 %v539, %v438
    %v544 = vmul.f32 %v540, %v440
    %v545 = vadd.f32 %v533, %v541
    %v546 = vadd.f32 %v534, %v542
    %v547 = vadd.f32 %v535, %v543
    %v548 = vadd.f32 %v536, %v544
    %v549 = vmul.f32 %v545, 30.0
    %v550 = vmul.f32 %v546, 30.0
    %v551 = vmul.f32 %v547, 30.0
    %v552 = vmul.f32 %v548, 30.0
    %553 = vst [vmem:[#allocation6] sm:$0xff] %v549
    %554 = vst [vmem:[#allocation6 + $0x8] sm:$0xff] %v550
    %555 = vst [vmem:[#allocation6 + $0x10] sm:$0xff] %v551
    %556 = vst [vmem:[#allocation6 + $0x18] sm:$0xff] %v552
    // Predicated region
    $region22: #{tpu_custom_call.1} parent=1 // pred_check
      _
    $region23: #{tpu_custom_call.1} parent=1 // pred_check_branch
      %558 = sbr.rel (0) target = $region25
    $region24: #{tpu_custom_call.1} parent=1 // pred_region
      %s560 = ssub.s32 512, 512
      %561 = vsyncadd [#allocation5], %s560
      %s562 = sshll.u32 [#allocation6], 4
      %s563 = int_to_ptr.vmem [resolvable:$true] %s562
      %568 = dma.vmem_to_hbm [thread:$0]  %s563, 512, %s3, [#allocation5], 256, 256, 16
    $region25: #{tpu_custom_call.1} parent=1 // pred_fallthru
      _
    // Predicated region
    $region26: #{tpu_custom_call.1} parent=1 // pred_check
      _
    $region27: #{tpu_custom_call.1} parent=1 // pred_check_branch
      %570 = sbr.rel (0) target = $region29
    $region28: #{tpu_custom_call.1} parent=1 // pred_region
      %571 = dma.done [#allocation5], 512
    $region29: #{tpu_custom_call.1} parent=1 // pred_fallthru
      _
    %572 = vsyncpa [#allocation4], 1
    %573 = vsyncpa [#allocation5], 1

</llo_original>
